<compile_context>
chip_gen: v5e
topology: v5e:2x2
jax: 0.10.0
libtpu: 0.0.40
codegen_flags: <defaults>
</compile_context>

<pallas_src>
import functools

import jax
import jax.numpy as jnp
from jax.experimental import pallas as pl
from jax.experimental.pallas import tpu as pltpu


def _shortcut_conv_kernel(xc_ref, top_ref, bot_ref, w_ref, b_ref, o_ref,
                          slab_ref, *, W, R, Cp):
    """Fused conv3x3 + bias + residual on one row-block of one image.

    xc_ref  : (Cp, R*W)      center rows [r0, r0+R) of image n (lane-dense)
    top_ref : (Cp, W)        image row r0-1 (zeros if r0 == 0)
    bot_ref : (Cp, W)        image row r0+R (zeros if r0+R == H)
    w_ref   : (3*Cp, 3*Cp)   weights, row = kw*Cp + cout, col = kh*Cp + cin
    b_ref   : (Cp, 1)        bias column
    o_ref   : (Cp, R*W)      output = x + conv(x) + bias
    slab_ref: (3*Cp, R*W)    VMEM scratch: the three vertical taps
    """
    L = R * W
    f32 = jnp.float32
    x = xc_ref[...].astype(f32)                                   # (Cp, L)

    # --- vertical-tap slab: row group kh holds x shifted by dh = kh-1 -----
    # kh = 0 (row above):  [ top | x[:, :L-W] ]
    slab_ref[pl.ds(0 * Cp, Cp), pl.ds(0, W)] = top_ref[...].astype(f32)
    slab_ref[pl.ds(0 * Cp, Cp), pl.ds(W, L - W)] = x[:, :L - W]
    # kh = 1 (center)
    slab_ref[pl.ds(1 * Cp, Cp), :] = x
    # kh = 2 (row below):  [ x[:, W:] | bot ]
    slab_ref[pl.ds(2 * Cp, Cp), pl.ds(0, L - W)] = x[:, W:]
    slab_ref[pl.ds(2 * Cp, Cp), pl.ds(L - W, W)] = bot_ref[...].astype(f32)

    # --- one MXU matmul for all three kw columns: (3Cp,3Cp)@(3Cp,L) -------
    z = jnp.dot(w_ref[...].astype(f32), slab_ref[...],
                preferred_element_type=f32)                        # (3Cp, L)

    # --- horizontal taps: +/-1 lane output rolls + left/right border mask --
    # (the mask also kills the roll's wrap-around at block ends, since every
    #  block starts at a row boundary).
    wpos = jax.lax.broadcasted_iota(jnp.int32, (Cp, L), 1) % W
    conv = z[Cp:2 * Cp, :]                                         # kw = 1
    conv = conv + jnp.where(wpos >= 1,
                            pltpu.roll(z[0:Cp, :], shift=1, axis=1), 0.0)
    conv = conv + jnp.where(wpos <= W - 2,
                            pltpu.roll(z[2 * Cp:, :], shift=L - 1, axis=1), 0.0)

    # --- residual + bias (lane-dense VPU) ----------------------------------
    o_ref[...] = (x + conv + b_ref[...].astype(f32)).astype(o_ref.dtype)


def _pick_row_block(H, W, Cp, target_bytes=1 << 20):
    """Largest R dividing H with (R*W) % 128 == 0 and center block <= target."""
    cands = [R for R in range(2, H + 1)
             if H % R == 0 and ((R * W) % 128 == 0 or R == H)]
    if not cands:
        return H
    fitting = [R for R in cands if Cp * R * W * 4 <= target_bytes]
    return max(fitting) if fitting else min(cands)


@functools.partial(jax.jit, static_argnames=("row_block",))
def shortcut_block(x_nchw, weight_hwio, bias, *, row_block=None):
    """output = x + Conv3x3(x) + bias, PyTorch-NCHW in/out."""
    N, C, H, W = x_nchw.shape
    assert H >= 2 and W >= 2
    Cp = ((C + 7) // 8) * 8
    R = row_block if row_block is not None else _pick_row_block(H, W, Cp)
    assert H % R == 0 and ((R * W) % 128 == 0 or R == H), "bad row_block"
    RB = H // R
    L = R * W

    # NCHW already has channels on sublanes / (h, w) on lanes per image:
    # only a channel pad (iff C % 8 != 0) and free reshapes, no transposes.
    xp = x_nchw
    if Cp != C:
        xp = jnp.pad(xp, ((0, 0), (0, Cp - C), (0, 0), (0, 0)))
    x3 = xp.reshape(N, Cp, H * W)

    # Halo rows per block (zeros at image top/bottom => conv zero padding in H).
    zrow = jnp.zeros((N, Cp, 1, W), xp.dtype)
    tops = jnp.concatenate([zrow, xp[:, :, R - 1:H - 1:R, :]], axis=2)  # row r0-1
    bots = jnp.concatenate([xp[:, :, R:H:R, :], zrow], axis=2)          # row r0+R
    tops = jnp.transpose(tops, (0, 2, 1, 3))                            # (N,RB,Cp,W)
    bots = jnp.transpose(bots, (0, 2, 1, 3))

    # HWIO (kh,kw,ci,co) -> (3*Cp, 3*Cp): row = kw*Cp + co, col = kh*Cp + ci.
    w = jnp.transpose(weight_hwio, (1, 3, 0, 2))                        # (kw,co,kh,ci)
    if Cp != C:
        w = jnp.pad(w, ((0, 0), (0, Cp - C), (0, 0), (0, Cp - C)))
    w_mat = w.reshape(3 * Cp, 3 * Cp)

    b_col = bias.reshape(C, 1)
    if Cp != C:
        b_col = jnp.pad(b_col, ((0, Cp - C), (0, 0)))

    kernel = functools.partial(_shortcut_conv_kernel, W=W, R=R, Cp=Cp)
    itemsize = x_nchw.dtype.itemsize
    flops = 2 * N * H * W * C * C * 9 + 2 * N * C * H * W
    bytes_accessed = (x3.size + tops.size + bots.size + w_mat.size
                      + b_col.size + N * Cp * H * W) * itemsize

    out3 = pl.pallas_call(
        kernel,
        grid=(N, RB),
        in_specs=[
            # center rows, auto-pipelined per (image, row-block)
            pl.BlockSpec((None, Cp, L), lambda n, rb: (n, 0, rb)),
            # 1-row top / bottom halos, auto-pipelined tiny blocks
            pl.BlockSpec((None, None, Cp, W), lambda n, rb: (n, rb, 0, 0)),
            pl.BlockSpec((None, None, Cp, W), lambda n, rb: (n, rb, 0, 0)),
            # weights & bias: constant index_map -> fetched once, VMEM-resident
            pl.BlockSpec((3 * Cp, 3 * Cp), lambda n, rb: (0, 0)),
            pl.BlockSpec((Cp, 1), lambda n, rb: (0, 0)),
        ],
        out_specs=pl.BlockSpec((None, Cp, L), lambda n, rb: (n, 0, rb)),
        out_shape=jax.ShapeDtypeStruct((N, Cp, H * W), x_nchw.dtype),
        scratch_shapes=[pltpu.VMEM((3 * Cp, L), jnp.float32)],
        compiler_params=pltpu.CompilerParams(
            dimension_semantics=("parallel", "parallel"),
            vmem_limit_bytes=48 * 1024 * 1024),
        cost_estimate=pl.CostEstimate(flops=flops, transcendentals=0,
                                      bytes_accessed=bytes_accessed),
    )(x3, tops, bots, w_mat, b_col)

    out = out3.reshape(N, Cp, H, W)
    if Cp != C:
        out = out[:, :C]
    return out


def _reference(x_nchw, weight_hwio, bias):
    # Pure-JAX reference: x + conv3x3(x) + bias, padding=1.
    w_oihw = jnp.transpose(weight_hwio, (3, 2, 0, 1))                   # HWIO->OIHW
    conv = jax.lax.conv_general_dilated(
        x_nchw, w_oihw, window_strides=(1, 1), padding=((1, 1), (1, 1)),
        dimension_numbers=("NCHW", "OIHW", "NCHW"))
    return x_nchw + conv + bias.reshape(1, -1, 1, 1)


if __name__ == "__main__":
    key = jax.random.PRNGKey(0)
    kx, kw, kb = jax.random.split(key, 3)

    N, C, H, W = 2, 4, 16, 16
    x = jax.random.normal(kx, (N, C, H, W), dtype=jnp.float32)
    # Deterministic synthetic Conv2d(C, C, 3, padding=1) parameters.
    weight_hwio = jax.random.normal(kw, (3, 3, C, C), dtype=jnp.float32) * 0.1
    bias = jax.random.normal(kb, (C,), dtype=jnp.float32) * 0.1

    ref = _reference(x, weight_hwio, bias)

    # row_block=8 exercises the multi-block / real-halo path (grid (2, 2));
    # row_block=None uses the auto-sized single block per image (grid (2, 1)).
    for rb in (8, None):
        out = jax.block_until_ready(
            shortcut_block(x, weight_hwio, bias, row_block=rb))
        if not jnp.allclose(out, ref, atol=1e-4, rtol=1e-4):
            raise AssertionError(
                f"Pallas ShortcutBlock mismatch vs reference (row_block={rb})")

    print("KERNEL_OK")
</pallas_src>

<mosaic_0001>
module attributes {stable_mosaic.version = 11 : i64} {
  func.func @_shortcut_conv_kernel(%arg0: i32, %arg1: i32, %arg2: memref<1x8x128xf32, #tpu.memory_space<vmem>>, %arg3: memref<1x1x8x16xf32, #tpu.memory_space<vmem>>, %arg4: memref<1x1x8x16xf32, #tpu.memory_space<vmem>>, %arg5: memref<24x24xf32, #tpu.memory_space<vmem>>, %arg6: memref<8x1xf32, #tpu.memory_space<vmem>>, %arg7: memref<1x8x128xf32, #tpu.memory_space<vmem>>, %arg8: memref<24x128xf32, #tpu.memory_space<vmem>>) attributes {dimension_semantics = [#tpu.dimension_semantics<parallel>, #tpu.dimension_semantics<parallel>], iteration_bounds = array<i64: 2, 2>, scalar_prefetch = 0 : i64, scratch_operands = 1 : i64, tpu.core_type = #tpu.core_type<tc>, window_params = [{transform_indices = @transform_0, window_bounds = array<i64: 1, 8, 128>}, {transform_indices = @transform_1, window_bounds = array<i64: 1, 1, 8, 16>}, {transform_indices = @transform_2, window_bounds = array<i64: 1, 1, 8, 16>}, {pipeline_mode = #tpu.pipeline_mode<synchronous>, transform_indices = @transform_3, window_bounds = array<i64: 24, 24>}, {pipeline_mode = #tpu.pipeline_mode<synchronous>, transform_indices = @transform_4, window_bounds = array<i64: 8, 1>}, {transform_indices = @transform_5, window_bounds = array<i64: 1, 8, 128>}]} {
    %c0 = arith.constant 0 : index
    %c0_0 = arith.constant 0 : index
    %c0_1 = arith.constant 0 : index
    %0 = vector.load %arg2[%c0, %c0_0, %c0_1] : memref<1x8x128xf32, #tpu.memory_space<vmem>>, vector<1x8x128xf32>
    %1 = vector.shape_cast %0 : vector<1x8x128xf32> to vector<8x128xf32>
    %c0_2 = arith.constant 0 : index
    %c0_3 = arith.constant 0 : index
    %c0_4 = arith.constant 0 : index
    %c0_5 = arith.constant 0 : index
    %2 = vector.load %arg3[%c0_2, %c0_3, %c0_4, %c0_5] : memref<1x1x8x16xf32, #tpu.memory_space<vmem>>, vector<1x1x8x16xf32>
    %3 = vector.shape_cast %2 : vector<1x1x8x16xf32> to vector<8x16xf32>
    %c0_6 = arith.constant 0 : index
    %c0_7 = arith.constant 0 : index
    %4 = vector.load %arg8[%c0_6, %c0_7] : memref<24x128xf32, #tpu.memory_space<vmem>>, vector<8x16xf32>
    tpu.vector_store %arg8[%c0_6, %c0_7], %3 {strides = array<i32>} : memref<24x128xf32, #tpu.memory_space<vmem>>, vector<8x16xf32>,
    %5 = vector.extract_strided_slice %1 {offsets = [0, 0], sizes = [8, 112], strides = [1, 1]} : vector<8x128xf32> to vector<8x112xf32>
    %c0_8 = arith.constant 0 : index
    %c16 = arith.constant 16 : index
    %6 = vector.load %arg8[%c0_8, %c16] : memref<24x128xf32, #tpu.memory_space<vmem>>, vector<8x112xf32>
    tpu.vector_store %arg8[%c0_8, %c16], %5 {strides = array<i32>} : memref<24x128xf32, #tpu.memory_space<vmem>>, vector<8x112xf32>,
    %c8 = arith.constant 8 : index
    %c0_9 = arith.constant 0 : index
    %7 = vector.load %arg8[%c8, %c0_9] : memref<24x128xf32, #tpu.memory_space<vmem>>, vector<8x128xf32>
    tpu.vector_store %arg8[%c8, %c0_9], %1 {strides = array<i32>} : memref<24x128xf32, #tpu.memory_space<vmem>>, vector<8x128xf32>,
    %8 = vector.extract_strided_slice %1 {offsets = [0, 16], sizes = [8, 112], strides = [1, 1]} : vector<8x128xf32> to vector<8x112xf32>
    %c16_10 = arith.constant 16 : index
    %c0_11 = arith.constant 0 : index
    %9 = vector.load %arg8[%c16_10, %c0_11] : memref<24x128xf32, #tpu.memory_space<vmem>>, vector<8x112xf32>
    tpu.vector_store %arg8[%c16_10, %c0_11], %8 {strides = array<i32>} : memref<24x128xf32, #tpu.memory_space<vmem>>, vector<8x112xf32>,
    %c0_12 = arith.constant 0 : index
    %c0_13 = arith.constant 0 : index
    %c0_14 = arith.constant 0 : index
    %c0_15 = arith.constant 0 : index
    %10 = vector.load %arg4[%c0_12, %c0_13, %c0_14, %c0_15] : memref<1x1x8x16xf32, #tpu.memory_space<vmem>>, vector<1x1x8x16xf32>
    %11 = vector.shape_cast %10 : vector<1x1x8x16xf32> to vector<8x16xf32>
    %c16_16 = arith.constant 16 : index
    %c112 = arith.constant 112 : index
    %12 = vector.load %arg8[%c16_16, %c112] : memref<24x128xf32, #tpu.memory_space<vmem>>, vector<8x16xf32>
    tpu.vector_store %arg8[%c16_16, %c112], %11 {strides = array<i32>} : memref<24x128xf32, #tpu.memory_space<vmem>>, vector<8x16xf32>,
    %c0_17 = arith.constant 0 : index
    %c0_18 = arith.constant 0 : index
    %13 = vector.load %arg5[%c0_17, %c0_18] : memref<24x24xf32, #tpu.memory_space<vmem>>, vector<24x24xf32>
    %c0_19 = arith.constant 0 : index
    %c0_20 = arith.constant 0 : index
    %14 = vector.load %arg8[%c0_19, %c0_20] : memref<24x128xf32, #tpu.memory_space<vmem>>, vector<24x128xf32>
    %cst = arith.constant dense<0.000000e+00> : vector<24x128xf32>
    %15 = tpu.matmul %13, %14, %cst {dimension_numbers = #tpu.dot_dimension_numbers<[1], [0], [0], [1], [0, 0, 1, 1], [], []>} : vector<24x24xf32>, vector<24x128xf32>, vector<24x128xf32> -> vector<24x128xf32>
    %16 = tpu.iota {dimensions = array<i32: 1>} : vector<8x128xi32>
    %c16_i32 = arith.constant 16 : i32
    %c0_i32 = arith.constant 0 : i32
    %17 = arith.cmpi eq, %c16_i32, %c0_i32 : i32
    %c1_i32 = arith.constant 1 : i32
    %18 = arith.select %17, %c1_i32, %c16_i32 : i32
    %19 = vector.broadcast %18 : i32 to vector<8x128xi32>
    %20 = arith.remsi %16, %19 : vector<8x128xi32>
    %c0_i32_21 = arith.constant 0 : i32
    %21 = vector.broadcast %c0_i32_21 : i32 to vector<8x128xi32>
    %22 = arith.cmpi ne, %20, %21 : vector<8x128xi32>
    %c0_i32_22 = arith.constant 0 : i32
    %23 = vector.broadcast %c0_i32_22 : i32 to vector<8x128xi32>
    %24 = arith.cmpi slt, %20, %23 : vector<8x128xi32>
    %c0_i32_23 = arith.constant 0 : i32
    %25 = arith.cmpi slt, %18, %c0_i32_23 : i32
    %26 = vector.broadcast %25 : i1 to vector<8x128xi1>
    %27 = vector.broadcast %26 : vector<8x128xi1> to vector<8x128xi1>
    %28 = arith.xori %24, %27 : vector<8x128xi1>
    %29 = arith.andi %28, %22 : vector<8x128xi1>
    %30 = vector.broadcast %18 : i32 to vector<8x128xi32>
    %31 = arith.addi %20, %30 : vector<8x128xi32>
    %32 = arith.select %29, %31, %20 : vector<8x128xi1>, vector<8x128xi32>
    %33 = vector.extract_strided_slice %15 {offsets = [8, 0], sizes = [8, 128], strides = [1, 1]} : vector<24x128xf32> to vector<8x128xf32>
    %c1_i32_24 = arith.constant 1 : i32
    %34 = vector.broadcast %c1_i32_24 : i32 to vector<8x128xi32>
    %35 = arith.cmpi sge, %32, %34 : vector<8x128xi32>
    %36 = vector.extract_strided_slice %15 {offsets = [0, 0], sizes = [8, 128], strides = [1, 1]} : vector<24x128xf32> to vector<8x128xf32>
    %c1_i32_25 = arith.constant 1 : i32
    %37 = tpu.dynamic_rotate %36 by %c1_i32_25 dim 1 : vector<8x128xf32>, i32 -> vector<8x128xf32>
    %cst_26 = arith.constant 0.000000e+00 : f32
    %38 = vector.broadcast %cst_26 : f32 to vector<8x128xf32>
    %39 = arith.select %35, %37, %38 : vector<8x128xi1>, vector<8x128xf32>
    %40 = arith.addf %33, %39 : vector<8x128xf32>
    %c14_i32 = arith.constant 14 : i32
    %41 = vector.broadcast %c14_i32 : i32 to vector<8x128xi32>
    %42 = arith.cmpi sle, %32, %41 : vector<8x128xi32>
    %43 = vector.extract_strided_slice %15 {offsets = [16, 0], sizes = [8, 128], strides = [1, 1]} : vector<24x128xf32> to vector<8x128xf32>
    %c127_i32 = arith.constant 127 : i32
    %44 = tpu.dynamic_rotate %43 by %c127_i32 dim 1 : vector<8x128xf32>, i32 -> vector<8x128xf32>
    %cst_27 = arith.constant 0.000000e+00 : f32
    %45 = vector.broadcast %cst_27 : f32 to vector<8x128xf32>
    %46 = arith.select %42, %44, %45 : vector<8x128xi1>, vector<8x128xf32>
    %47 = arith.addf %40, %46 : vector<8x128xf32>
    %48 = arith.addf %1, %47 : vector<8x128xf32>
    %c0_28 = arith.constant 0 : index
    %c0_29 = arith.constant 0 : index
    %49 = vector.load %arg6[%c0_28, %c0_29] : memref<8x1xf32, #tpu.memory_space<vmem>>, vector<8x1xf32>
    %50 = vector.broadcast %49 : vector<8x1xf32> to vector<8x128xf32>
    %51 = arith.addf %48, %50 : vector<8x128xf32>
    %c0_30 = arith.constant 0 : index
    %c0_31 = arith.constant 0 : index
    %c0_32 = arith.constant 0 : index
    %52 = vector.load %arg7[%c0_30, %c0_31, %c0_32] : memref<1x8x128xf32, #tpu.memory_space<vmem>>, vector<1x8x128xf32>
    %53 = vector.shape_cast %52 : vector<1x8x128xf32> to vector<8x128xf32>
    %54 = vector.shape_cast %51 : vector<8x128xf32> to vector<1x8x128xf32>
    tpu.vector_store %arg7[%c0_30, %c0_31, %c0_32], %54 {strides = array<i32>} : memref<1x8x128xf32, #tpu.memory_space<vmem>>, vector<1x8x128xf32>,
    return
  }
  func.func @transform_0(%arg0: i32, %arg1: i32) -> (i32, i32, i32) {
    %c0_i32 = arith.constant 0 : i32
    %c0_i32_0 = arith.constant 0 : i32
    return %arg0, %c0_i32, %arg1 : i32, i32, i32
  }
  func.func @transform_1(%arg0: i32, %arg1: i32) -> (i32, i32, i32, i32) {
    %c0_i32 = arith.constant 0 : i32
    %c0_i32_0 = arith.constant 0 : i32
    %c0_i32_1 = arith.constant 0 : i32
    return %arg0, %arg1, %c0_i32, %c0_i32_0 : i32, i32, i32, i32
  }
  func.func @transform_2(%arg0: i32, %arg1: i32) -> (i32, i32, i32, i32) {
    %c0_i32 = arith.constant 0 : i32
    %c0_i32_0 = arith.constant 0 : i32
    %c0_i32_1 = arith.constant 0 : i32
    return %arg0, %arg1, %c0_i32, %c0_i32_0 : i32, i32, i32, i32
  }
  func.func @transform_3(%arg0: i32, %arg1: i32) -> (i32, i32) {
    %c0_i32 = arith.constant 0 : i32
    %c0_i32_0 = arith.constant 0 : i32
    %c0_i32_1 = arith.constant 0 : i32
    return %c0_i32, %c0_i32_0 : i32, i32
  }
  func.func @transform_4(%arg0: i32, %arg1: i32) -> (i32, i32) {
    %c0_i32 = arith.constant 0 : i32
    %c0_i32_0 = arith.constant 0 : i32
    %c0_i32_1 = arith.constant 0 : i32
    return %c0_i32, %c0_i32_0 : i32, i32
  }
  func.func @transform_5(%arg0: i32, %arg1: i32) -> (i32, i32, i32) {
    %c0_i32 = arith.constant 0 : i32
    %c0_i32_0 = arith.constant 0 : i32
    return %arg0, %c0_i32, %arg1 : i32, i32, i32
  }
}

</mosaic_0001>

<llo_original>
// kernel: shortcut_block.1
$region0: #{shortcut_block.1}
  #allocation0 [shape = 'u32[]', space=smem, size = 0x4, offset = 0x4, fixed_abs, tag = 'smem constant byte address 0x4 - core index']
  #allocation1 [shape = 'u32[72,128]{1,0:T(1,128)}', space=vmem, size = 0x9000, scoped, tag = 'internal scratch']
  #allocation2 [shape = 'f32[24,128]{1,0:T(8,128)}', space=vmem, size = 0x3000, scoped, tag = 'scratch operand']
  %s0 = inlined_call_operand.vmem [shape: f32[2,8,256], index: 0, kind: input, shape index: {}]
  %s1 = inlined_call_operand.vmem [shape: f32[2,2,8,16], index: 1, kind: input, shape index: {}]
  %s2 = inlined_call_operand.vmem [shape: f32[2,2,8,16], index: 2, kind: input, shape index: {}]
  %s3 = inlined_call_operand.vmem [shape: f32[24,24], index: 3, kind: input, shape index: {}]
  %s4 = inlined_call_operand.vmem [shape: f32[8,1], index: 4, kind: input, shape index: {}]
  %s5 = inlined_call_operand.vmem [shape: f32[2,8,256], index: 5, kind: output, shape index: {}]
  %s6 = sld [smem:[#allocation0]]
  $region53: #{shortcut_block.1} parent=0
    _
  %s8 = ssub.s32 1, %s6
  %s9 = scalar_select 0, %s8, %s6
  loop: start=0, step=1, limit=6
  $region2: #{shortcut_block.1} parent=0 // loop_pre_header
    _
  $region3: #{shortcut_block.1} parent=0 // loop_header
    %s11 = sphi 0, %s15
    %p12 = scmp.ge.s32.totalorder %s11, 6
    %s18 = sphi 0, %s30
    %s19 = sphi 0, %s26
    %s20 = sphi 0, %s18
    %s21 = sphi 0, %s19
    %s22 = sphi 0, %s20
    %s23 = sphi 0, %s21
    %s35 = sphi 0, %s37
    %s38 = sphi 0, %s35
    %s39 = sphi 0, %s38
    %s55 = sphi 0, %s39
    %s63 = sphi 0, %s65
    %s66 = sphi 0, %s63
    %s67 = sphi 0, %s66
    %s83 = sphi 0, %s67
    %s91 = sphi 0, %s93
    %s94 = sphi 0, %s91
    %s95 = sphi 0, %s94
    %s111 = sphi 0, %s95
    %s115 = sphi 0, %s115
    %s117 = sphi 0, %s115
    %s118 = sphi 0, %s117
    %s132 = sphi 0, %s118
    %s136 = sphi 0, %s136
    %s138 = sphi 0, %s136
    %s139 = sphi 0, %s138
    %s153 = sphi 0, %s139
    %s161 = sphi 0, %s163
    %s164 = sphi 0, %s161
    %s165 = sphi 0, %s164
    %s181 = sphi 0, %s165
  $region4: #{shortcut_block.1} parent=0 // loop_header_branch
    %14 = sbr.rel (%p12) target = $region8
  $region5: #{shortcut_block.1} parent=0 // loop_body
    %s16 = ssub.s32 %s11, 1
    %s17 = ssub.s32 %s11, 2
    %s24 = sadd.s32 1, %s19
    %p25 = scmp.ge.s32.totalorder %s24, 2
    %s26 = scalar_select %p25, 0, %s24
    %s27 = sadd.s32 1, %s18
    %s28 = scalar_select %p25, %s27, %s18
    %p29 = scmp.ge.s32.totalorder %s28, 2
    %s30 = scalar_select %p29, 0, %s28
    %s31 = ssub.s32 %s18, %s30
    %s32 = ssub.s32 %s19, %s26
    %s33 = sor.u32 %s31, %s32
    %p34 = scmp.eq.s32.totalorder %s33, 0
    %s36 = sadd.s32 %s35, 1
    %s37 = scalar_select %p34, %s35, %s36
    %p40 = pneg %p34
    %p41 = scmp.eq.s32.totalorder %s11, 3
    %p42 = por %p40, %p41
    %p43 = scmp.ne.s32.totalorder %s35, %s38
    %p44 = scmp.eq.s32.totalorder %s11, 0
    %p45 = por %p43, %p44
    %p46 = scmp.ne.s32.totalorder %s35, %s38
    %p47 = scmp.eq.s32.totalorder %s16, 3
    %p48 = por %p46, %p47
    %p49 = scmp.ne.s32.totalorder %s38, %s39
    %p50 = scmp.eq.s32.totalorder %s16, 0
    %p51 = por %p49, %p50
    %p52 = scmp.ne.s32.totalorder %s38, %s39
    %p53 = scmp.eq.s32.totalorder %s17, 3
    %p54 = por %p52, %p53
    %p56 = scmp.ne.s32.totalorder %s39, %s55
    %p57 = scmp.eq.s32.totalorder %s17, 0
    %p58 = por %p56, %p57
    %s59 = ssub.s32 %s18, %s30
    %s60 = ssub.s32 %s19, %s26
    %s61 = sor.u32 %s59, %s60
    %p62 = scmp.eq.s32.totalorder %s61, 0
    %s64 = sadd.s32 %s63, 1
    %s65 = scalar_select %p62, %s63, %s64
    %p68 = pneg %p62
    %p69 = scmp.eq.s32.totalorder %s11, 3
    %p70 = por %p68, %p69
    %p71 = scmp.ne.s32.totalorder %s63, %s66
    %p72 = scmp.eq.s32.totalorder %s11, 0
    %p73 = por %p71, %p72
    %p74 = scmp.ne.s32.totalorder %s63, %s66
    %p75 = scmp.eq.s32.totalorder %s16, 3
    %p76 = por %p74, %p75
    %p77 = scmp.ne.s32.totalorder %s66, %s67
    %p78 = scmp.eq.s32.totalorder %s16, 0
    %p79 = por %p77, %p78
    %p80 = scmp.ne.s32.totalorder %s66, %s67
    %p81 = scmp.eq.s32.totalorder %s17, 3
    %p82 = por %p80, %p81
    %p84 = scmp.ne.s32.totalorder %s67, %s83
    %p85 = scmp.eq.s32.totalorder %s17, 0
    %p86 = por %p84, %p85
    %s87 = ssub.s32 %s18, %s30
    %s88 = ssub.s32 %s19, %s26
    %s89 = sor.u32 %s87, %s88
    %p90 = scmp.eq.s32.totalorder %s89, 0
    %s92 = sadd.s32 %s91, 1
    %s93 = scalar_select %p90, %s91, %s92
    %p96 = pneg %p90
    %p97 = scmp.eq.s32.totalorder %s11, 3
    %p98 = por %p96, %p97
    %p99 = scmp.ne.s32.totalorder %s91, %s94
    %p100 = scmp.eq.s32.totalorder %s11, 0
    %p101 = por %p99, %p100
    %p102 = scmp.ne.s32.totalorder %s91, %s94
    %p103 = scmp.eq.s32.totalorder %s16, 3
    %p104 = por %p102, %p103
    %p105 = scmp.ne.s32.totalorder %s94, %s95
    %p106 = scmp.eq.s32.totalorder %s16, 0
    %p107 = por %p105, %p106
    %p108 = scmp.ne.s32.totalorder %s94, %s95
    %p109 = scmp.eq.s32.totalorder %s17, 3
    %p110 = por %p108, %p109
    %p112 = scmp.ne.s32.totalorder %s95, %s111
    %p113 = scmp.eq.s32.totalorder %s17, 0
    %p114 = por %p112, %p113
    %s116 = sadd.s32 %s115, 1
    %p119 = scmp.eq.s32.totalorder %s11, 3
    %p120 = scmp.ne.s32.totalorder %s115, %s117
    %p121 = scmp.eq.s32.totalorder %s11, 0
    %p122 = por %p120, %p121
    %p123 = scmp.ne.s32.totalorder %s115, %s117
    %p124 = scmp.eq.s32.totalorder %s16, 3
    %p125 = por %p123, %p124
    %p126 = scmp.ne.s32.totalorder %s117, %s118
    %p127 = scmp.eq.s32.totalorder %s16, 0
    %p128 = por %p126, %p127
    %p129 = scmp.ne.s32.totalorder %s117, %s118
    %p130 = scmp.eq.s32.totalorder %s17, 3
    %p131 = por %p129, %p130
    %p133 = scmp.ne.s32.totalorder %s118, %s132
    %p134 = scmp.eq.s32.totalorder %s17, 0
    %p135 = por %p133, %p134
    %s137 = sadd.s32 %s136, 1
    %p140 = scmp.eq.s32.totalorder %s11, 3
    %p141 = scmp.ne.s32.totalorder %s136, %s138
    %p142 = scmp.eq.s32.totalorder %s11, 0
    %p143 = por %p141, %p142
    %p144 = scmp.ne.s32.totalorder %s136, %s138
    %p145 = scmp.eq.s32.totalorder %s16, 3
    %p146 = por %p144, %p145
    %p147 = scmp.ne.s32.totalorder %s138, %s139
    %p148 = scmp.eq.s32.totalorder %s16, 0
    %p149 = por %p147, %p148
    %p150 = scmp.ne.s32.totalorder %s138, %s139
    %p151 = scmp.eq.s32.totalorder %s17, 3
    %p152 = por %p150, %p151
    %p154 = scmp.ne.s32.totalorder %s139, %s153
    %p155 = scmp.eq.s32.totalorder %s17, 0
    %p156 = por %p154, %p155
    %s157 = ssub.s32 %s18, %s30
    %s158 = ssub.s32 %s19, %s26
    %s159 = sor.u32 %s157, %s158
    %p160 = scmp.eq.s32.totalorder %s159, 0
    %s162 = sadd.s32 %s161, 1
    %s163 = scalar_select %p160, %s161, %s162
    %p166 = pneg %p160
    %p167 = scmp.eq.s32.totalorder %s11, 3
    %p168 = por %p166, %p167
    %p169 = scmp.ne.s32.totalorder %s161, %s164
    %p170 = scmp.eq.s32.totalorder %s11, 0
    %p171 = por %p169, %p170
    %p172 = scmp.ne.s32.totalorder %s161, %s164
    %p173 = scmp.eq.s32.totalorder %s16, 3
    %p174 = por %p172, %p173
    %p175 = scmp.ne.s32.totalorder %s164, %s165
    %p176 = scmp.eq.s32.totalorder %s16, 0
    %p177 = por %p175, %p176
    %p178 = scmp.ne.s32.totalorder %s164, %s165
    %p179 = scmp.eq.s32.totalorder %s17, 3
    %p180 = por %p178, %p179
    %p182 = scmp.ne.s32.totalorder %s165, %s181
    %p183 = scmp.eq.s32.totalorder %s17, 0
    %p184 = por %p182, %p183
    %p185 = scmp.le.s32.totalorder 1, %s11
    %p186 = scmp.lt.s32.totalorder %s11, 5
    %p187 = pnand %p185, %p186
    %p188 = pneg %p187
    // Predicated region
    $region9: #{shortcut_block.1} parent=5 // pred_check
      _
    $region10: #{shortcut_block.1} parent=5 // pred_check_branch
      %190 = sbr.rel (%p187) target = $region12
    $region11: #{shortcut_block.1} parent=5 // pred_region
      %s191 = ssub.s32 %s11, 1
      // Predicated region
      $region13: #{shortcut_block.1} parent=11 // pred_check
        %p192 = pneg %p128
      $region14: #{shortcut_block.1} parent=11 // pred_check_branch
        %194 = sbr.rel (%p192) target = $region16
      $region15: #{shortcut_block.1} parent=11 // pred_region
        _
      $region16: #{shortcut_block.1} parent=11 // pred_fallthru
        _
      // Predicated region
      $region17: #{shortcut_block.1} parent=11 // pred_check
        %p195 = pneg %p149
      $region18: #{shortcut_block.1} parent=11 // pred_check_branch
        %197 = sbr.rel (%p195) target = $region20
      $region19: #{shortcut_block.1} parent=11 // pred_region
        _
      $region20: #{shortcut_block.1} parent=11 // pred_fallthru
        _
    $region12: #{shortcut_block.1} parent=5 // pred_fallthru
      _
    %p198 = scmp.lt.s32.totalorder %s11, 4
    // Predicated region
    $region21: #{shortcut_block.1} parent=5 // pred_check
      %p199 = pneg %p198
    $region22: #{shortcut_block.1} parent=5 // pred_check_branch
      %201 = sbr.rel (%p199) target = $region24
    $region23: #{shortcut_block.1} parent=5 // pred_region
      // Predicated region
      $region25: #{shortcut_block.1} parent=23 // pred_check
        %p202 = pneg %p45
      $region26: #{shortcut_block.1} parent=23 // pred_check_branch
        %204 = sbr.rel (%p202) target = $region28
      $region27: #{shortcut_block.1} parent=23 // pred_region
        %p205 = scmp.lt.s32.totalorder %s18, 1
        %s206 = scalar_select %p205, %s18, 1
        %p207 = scmp.lt.s32.totalorder %s19, 1
        %s208 = scalar_select %p207, %s19, 1
        %s209 = smul.addr %s206, 2
        %s210 = sadd.s32 %s208, %s209
        %s211 = smul.addr %s210, 8
        %s212 = scalar_lea.vmem %s0, %s211
      $region28: #{shortcut_block.1} parent=23 // pred_fallthru
        _
      // Predicated region
      $region29: #{shortcut_block.1} parent=23 // pred_check
        %p213 = pneg %p73
      $region30: #{shortcut_block.1} parent=23 // pred_check_branch
        %215 = sbr.rel (%p213) target = $region32
      $region31: #{shortcut_block.1} parent=23 // pred_region
        %p216 = scmp.lt.s32.totalorder %s18, 1
        %s217 = scalar_select %p216, %s18, 1
        %p218 = scmp.lt.s32.totalorder %s19, 1
        %s219 = scalar_select %p218, %s19, 1
        %s220 = smul.addr %s217, 2
        %s221 = sadd.s32 %s219, %s220
        %s222 = smul.addr %s221, 8
        %s223 = scalar_lea.vmem %s1, %s222
      $region32: #{shortcut_block.1} parent=23 // pred_fallthru
        _
      // Predicated region
      $region33: #{shortcut_block.1} parent=23 // pred_check
        %p224 = pneg %p101
      $region34: #{shortcut_block.1} parent=23 // pred_check_branch
        %226 = sbr.rel (%p224) target = $region36
      $region35: #{shortcut_block.1} parent=23 // pred_region
        %p227 = scmp.lt.s32.totalorder %s18, 1
        %s228 = scalar_select %p227, %s18, 1
        %p229 = scmp.lt.s32.totalorder %s19, 1
        %s230 = scalar_select %p229, %s19, 1
        %s231 = smul.addr %s228, 2
        %s232 = sadd.s32 %s230, %s231
        %s233 = smul.addr %s232, 8
        %s234 = scalar_lea.vmem %s2, %s233
      $region36: #{shortcut_block.1} parent=23 // pred_fallthru
        _
    $region24: #{shortcut_block.1} parent=5 // pred_fallthru
      _
    %p235 = scmp.le.s32.totalorder 1, %s11
    %p236 = scmp.lt.s32.totalorder %s11, 5
    %p237 = pnand %p235, %p236
    %p238 = pneg %p237
    // Predicated region
    $region37: #{shortcut_block.1} parent=5 // pred_check
      _
    $region38: #{shortcut_block.1} parent=5 // pred_check_branch
      %240 = sbr.rel (%p237) target = $region40
    $region39: #{shortcut_block.1} parent=5 // pred_region
      %s241 = ssub.s32 %s11, 1
      %p242 = scmp.lt.s32.totalorder %s20, 1
      %s243 = scalar_select %p242, %s20, 1
      %p244 = scmp.lt.s32.totalorder %s21, 1
      %s245 = scalar_select %p244, %s21, 1
      %s246 = smul.addr %s243, 2
      %s247 = sadd.s32 %s245, %s246
      %s248 = smul.addr %s247, 8
      %s249 = scalar_lea.vmem %s0, %s248
      %p250 = pneg %p51
      %p251 = pneg %p48
      %p252 = scmp.lt.s32.totalorder %s20, 1
      %s253 = scalar_select %p252, %s20, 1
      %p254 = scmp.lt.s32.totalorder %s21, 1
      %s255 = scalar_select %p254, %s21, 1
      %s256 = smul.addr %s253, 2
      %s257 = sadd.s32 %s255, %s256
      %s258 = smul.addr %s257, 8
      %s259 = scalar_lea.vmem %s1, %s258
      %p260 = pneg %p79
      %p261 = pneg %p76
      %p262 = scmp.lt.s32.totalorder %s20, 1
      %s263 = scalar_select %p262, %s20, 1
      %p264 = scmp.lt.s32.totalorder %s21, 1
      %s265 = scalar_select %p264, %s21, 1
      %s266 = smul.addr %s263, 2
      %s267 = sadd.s32 %s265, %s266
      %s268 = smul.addr %s267, 8
      %s269 = scalar_lea.vmem %s2, %s268
      %p270 = pneg %p107
      %p271 = pneg %p104
      %p272 = pneg %p128
      %p273 = pneg %p125
      %p274 = pneg %p149
      %p275 = pneg %p146
      %p276 = pneg %p177
      %p277 = pneg %p174
      %p278 = scmp.lt.s32.totalorder %s20, 1
      %s279 = scalar_select %p278, %s20, 1
      %p280 = scmp.lt.s32.totalorder %s21, 1
      %s281 = scalar_select %p280, %s21, 1
      %s282 = smul.addr %s279, 2
      %s283 = sadd.s32 %s281, %s282
      %s284 = smul.addr %s283, 8
      %s285 = scalar_lea.vmem %s5, %s284
      %p286 = scmp.lt.s32.totalorder %s20, 1
      %s287 = scalar_select %p286, %s20, 1
      %p288 = scmp.lt.s32.totalorder %s21, 1
      %s289 = scalar_select %p288, %s21, 1
      %s290 = smul.addr %s287, 2
      %s291 = sadd.s32 %s289, %s290
      %s292 = smul.addr %s291, 8
      %s293 = scalar_lea.vmem %s0, %s292
      %p294 = scmp.lt.s32.totalorder %s20, 1
      %s295 = scalar_select %p294, %s20, 1
      %p296 = scmp.lt.s32.totalorder %s21, 1
      %s297 = scalar_select %p296, %s21, 1
      %s298 = smul.addr %s295, 2
      %s299 = sadd.s32 %s297, %s298
      %s300 = smul.addr %s299, 8
      %s301 = scalar_lea.vmem %s1, %s300
      %p302 = scmp.lt.s32.totalorder %s20, 1
      %s303 = scalar_select %p302, %s20, 1
      %p304 = scmp.lt.s32.totalorder %s21, 1
      %s305 = scalar_select %p304, %s21, 1
      %s306 = smul.addr %s303, 2
      %s307 = sadd.s32 %s305, %s306
      %s308 = smul.addr %s307, 8
      %s309 = scalar_lea.vmem %s2, %s308
      %p310 = scmp.lt.s32.totalorder %s20, 1
      %s311 = scalar_select %p310, %s20, 1
      %p312 = scmp.lt.s32.totalorder %s21, 1
      %s313 = scalar_select %p312, %s21, 1
      %s314 = smul.addr %s311, 2
      %s315 = sadd.s32 %s313, %s314
      %s316 = smul.addr %s315, 8
      %s317 = scalar_lea.vmem %s5, %s316
      %v318 = vld [vmem:[%s293] sm:$0xff]
      %v319 = vld [vmem:[%s301] sm:$0xff]
      %vm320 = vcmask 130048
      %321 = vst.msk [vmem:[#allocation2] sm:$0xff] %vm320, %v319
      %323 = vrot.lane.b32.xlu0 %v318, 16
      %v324 = vpop.permute.xlu0 %323
      %vm326 = vcmask 1047680
      %327 = vst.msk [vmem:[#allocation2] sm:$0xff] %vm326, %v324
      %328 = vst [vmem:[#allocation2 + $0x8] sm:$0xff] %v318
      %329 = vrot.lane.b32.xlu0 %v318, 112
      %v330 = vpop.permute.xlu0 %329
      %vm332 = vcmask 916480
      %333 = vst.msk [vmem:[#allocation2 + $0x10] sm:$0xff] %vm332, %v330
      %v334 = vld [vmem:[%s309] sm:$0xff]
      %336 = vrot.lane.b32.xlu0 %v334, 112
      %v337 = vpop.permute.xlu0 %336
      %vm339 = vcmask 1048448
      %340 = vst.msk [vmem:[#allocation2 + $0x10] sm:$0xff] %vm339, %v337
      %v341 = vld [vmem:[%s3] sm:$0xff]
      %v342 = vld [vmem:[%s3 + $0x8] sm:$0xff]
      %v343 = vld [vmem:[%s3 + $0x10] sm:$0xff]
      %v344 = vld [vmem:[#allocation2] sm:$0xff]
      %v345 = vld [vmem:[#allocation2 + $0x8] sm:$0xff]
      %v346 = vld [vmem:[#allocation2 + $0x10] sm:$0xff]
      %vm347 = vcmask 195584
      %v349 = vsel %vm347, %v341, 0
      %v352 = vsel %vm347, %v342, 0
      %v355 = vsel %vm347, %v343, 0
      %357 = vmatpush.msra.mxu0 0.0
      %358 = vmatpush.msra.mxu0 0.0
      %359 = vmatpush.msra.mxu0 0.0
      %360 = vmatpush.msra.mxu0 0.0
      %361 = vmatpush.msra.mxu0 0.0
      %362 = vmatpush.msra.mxu0 0.0
      %363 = vmatpush.msra.mxu0 0.0
      %364 = vmatpush.msra.mxu0 0.0
      %365 = vmatpush.msra.mxu0 0.0
      %366 = vmatpush.msra.mxu0 0.0
      %367 = vmatpush.msra.mxu0 0.0
      %368 = vmatpush.msra.mxu0 0.0
      %369 = vmatpush.msra.mxu0 0.0
      %370 = vmatpush.msra.mxu0 %v346
      %371 = vmatpush.msra.mxu0 %v345
      %372 = vmatpush.msra.mxu0 %v344
      %373 = vmatmul.f32.gmra.mxu0 %v349
      %v374 = vpop.f32.mrf.mxu0
      %v375 = vadd.f32 0.0, %v374
      %376 = vmatmul.f32.gmra.mxu0 %v352
      %v377 = vpop.f32.mrf.mxu0
      %v378 = vadd.f32 0.0, %v377
      %379 = vmatmul.f32.gmra.mxu0 %v355
      %v380 = vpop.f32.mrf.mxu0
      %v381 = vadd.f32 0.0, %v380
      %382 = vdwg.mxu0
      %v383 = vlaneseq
      %v384 = vand.u32 %v383, 127
      %vm385 = vcmp.lt.s32.totalorder %v384, 0
      %v386 = vsub.s32 0, %v384
      %v387 = vsel %vm385, %v386, %v384
      %v388 = vshrl.u32 %v387, 4
      %v389 = vand.u32 %v387, 15
      %v390 = vsub.s32 0, %v389
      %v391 = vsel %vm385, %v390, %v389
      %vm392 = vcmp.ne.s32.totalorder %v391, 0
      %vm393 = vcmp.lt.s32.totalorder %v391, 0
      %vm394 = vmand %vm393, %vm392
      %v395 = vadd.s32 %v391, 16
      %v396 = vsel %vm394, %v395, %v391
      %vm397 = vcmp.ge.s32.totalorder %v396, 1
      %398 = vrot.lane.b32.xlu0 %v375, 1
      %v399 = vpop.permute.xlu0 %398
      %v400 = vsel %vm397, %v399, 0.0
      %v401 = vadd.f32 %v378, %v400
      %vm402 = vcmp.le.s32.totalorder %v396, 14
      %403 = vrot.lane.b32.xlu0 %v381, 127
      %v404 = vpop.permute.xlu0 %403
      %v405 = vsel %vm402, %v404, 0.0
      %v406 = vadd.f32 %v401, %v405
      %v407 = vadd.f32 %v318, %v406
      %v408 = vld [vmem:[%s4] sm:$0xff]
      %410 = vset.pattern.permute.xlu0 0
      %411 = vperm.xlu0 %410, %v408
      %v412 = vpop.permute.xlu0 %411
      %v414 = vadd.f32 %v407, %v412
      %415 = vst [vmem:[%s317] sm:$0xff] %v414
      %p416 = scmp.lt.s32.totalorder %s20, 1
      %s417 = scalar_select %p416, %s20, 1
      %p418 = scmp.lt.s32.totalorder %s21, 1
      %s419 = scalar_select %p418, %s21, 1
      %s420 = smul.addr %s417, 2
      %s421 = sadd.s32 %s419, %s420
      %s422 = smul.addr %s421, 8
      %s423 = scalar_lea.vmem %s5, %s422
      // Predicated region
      $region41: #{shortcut_block.1} parent=39 // pred_check
        %p424 = pneg %p174
      $region42: #{shortcut_block.1} parent=39 // pred_check_branch
        %426 = sbr.rel (%p424) target = $region44
      $region43: #{shortcut_block.1} parent=39 // pred_region
        _
      $region44: #{shortcut_block.1} parent=39 // pred_fallthru
        _
    $region40: #{shortcut_block.1} parent=5 // pred_fallthru
      _
    %p427 = scmp.le.s32.totalorder 2, %s11
    // Predicated region
    $region45: #{shortcut_block.1} parent=5 // pred_check
      %p428 = pneg %p427
    $region46: #{shortcut_block.1} parent=5 // pred_check_branch
      %430 = sbr.rel (%p428) target = $region48
    $region47: #{shortcut_block.1} parent=5 // pred_region
      %s431 = ssub.s32 %s11, 2
      // Predicated region
      $region49: #{shortcut_block.1} parent=47 // pred_check
        %p432 = pneg %p180
      $region50: #{shortcut_block.1} parent=47 // pred_check_branch
        %434 = sbr.rel (%p432) target = $region52
      $region51: #{shortcut_block.1} parent=47 // pred_region
        %p435 = scmp.lt.s32.totalorder %s22, 1
        %s436 = scalar_select %p435, %s22, 1
        %p437 = scmp.lt.s32.totalorder %s23, 1
        %s438 = scalar_select %p437, %s23, 1
        %s439 = smul.addr %s436, 2
        %s440 = sadd.s32 %s438, %s439
        %s441 = smul.addr %s440, 8
        %s442 = scalar_lea.vmem %s5, %s441
      $region52: #{shortcut_block.1} parent=47 // pred_fallthru
        _
    $region48: #{shortcut_block.1} parent=5 // pred_fallthru
      _
  $region6: #{shortcut_block.1} parent=0 // loop_footer
    %s15 = sadd.s32 1, %s11
  $region7: #{shortcut_block.1} parent=0 // loop_footer_branch
    %10 = sbr.rel target = $region3
  $region8: #{shortcut_block.1} parent=0 // loop_exit
    _

</llo_original>
